<compile_context>
chip_gen: v7x
topology: tpu7x:2x2x1
jax: 0.10.0
libtpu: 0.0.40
codegen_flags: <defaults>
</compile_context>

<pallas_src>
import functools

import jax
import jax.numpy as jnp
from jax.experimental import pallas as pl
from jax.experimental.pallas import tpu as pltpu


def _round_up(n, m):
    return ((n + m - 1) // m) * m


def _group_reduce(x, op, group, num_groups):
    """Per-lane reduction over `num_groups` lanes spaced `group` apart along
    the last axis (action-major layout: lane a*group + e).  Every lane ends up
    holding the reduction over all groups at its within-group position.
    Circular rolls by multiples of `group` over the full (group*num_groups)
    width keep each lane inside its own within-group position, so no masking
    is needed.  Rolls use the XLU slot (free next to the VPU/MXU work)."""
    if num_groups == 1:
        return x
    if num_groups & (num_groups - 1) == 0:          # power of two: log tree
        acc, shift = x, group
        while shift < group * num_groups:
            acc = op(acc, pltpu.roll(acc, shift=shift, axis=1))
            shift *= 2
        return acc
    acc = x                                          # general: linear chain
    for g in range(1, num_groups):
        acc = op(acc, pltpu.roll(x, shift=g * group, axis=1))
    return acc


def agent_kernel(x_ref,
                 w1_ref, b1_ref,        # trunk first layer
                 w2h1_ref, b2h1_ref,    # trunk L2 folded into fused head L1
                 w2b_ref, b2b_ref,      # fused head L2 (block-diag, 128 cols)
                 perm_ref,              # (AE, 128) action-major -> torch-layout permutation
                 out_ref,               # (TB, 128): [policy probs | value | 0...]
                 *, num_emps, num_actions):
    E, A = num_emps, num_actions
    AE = A * E
    x = x_ref[...]

    # --- 3 matmuls total ---
    h = jnp.maximum(
        jnp.dot(x, w1_ref[...], preferred_element_type=jnp.float32) + b1_ref[...], 0.0)
    hh = jnp.maximum(
        jnp.dot(h, w2h1_ref[...], preferred_element_type=jnp.float32) + b2h1_ref[...], 0.0)
    out2 = jnp.dot(hh, w2b_ref[...], preferred_element_type=jnp.float32) + b2b_ref[...]
    # out2[:, :AE]   = policy logits, action-major (column a*E + e)
    # out2[:, AE]    = value
    # out2[:, AE+1:] = 0 (padding lanes)

    # --- softmax over actions (roll-based grouped max / sum on lanes 0..AE-1) ---
    logits = out2[:, :AE]
    m = _group_reduce(logits, jnp.maximum, E, A)      # per-emp max over actions
    p = jnp.exp(logits - m)                           # one full-width exp
    denom = _group_reduce(p, jnp.add, E, A)           # per-emp sum over actions
    # NOTE: approx reciprocal -> rows sum to 1 only to ~1e-3; use exact divide
    # if downstream needs exact log-probs / sampling normalization.
    pol = p * pl.reciprocal(denom, approx=True)

    # --- fold the (B,A,E)->(B,E,A) transpose into the kernel and emit one
    #     unmasked, lane-dense (TB, 128) store ---
    pol_t = jnp.dot(pol, perm_ref[...], preferred_element_type=jnp.float32)  # (TB, 128)
    lane = jax.lax.broadcasted_iota(jnp.int32, out2.shape, 1)
    out_ref[...] = jnp.where(lane < AE, pol_t, out2)


def agent_forward(x, kernel_params, *, num_emps, num_actions, block_b=1024):
    """Returns (value (B, 1), policy (B, E, A)) matching the torch module."""
    B = x.shape[0]
    A, E = num_actions, num_emps
    AE = A * E
    OUT_W = 128

    # Batch tile: big tiles amortize the ~0.35us/step overhead; when
    # 512 <= B <= block_b, split into >=2 grid steps so the "parallel" axis
    # can shard across both TensorCores on v7x.
    if B > block_b:
        TB = block_b
    elif B >= 512:
        TB = _round_up(pl.cdiv(B, 2), 8)
    else:
        TB = B
    grid = (pl.cdiv(B, TB),)

    # Weights: full-array blocks with constant index maps -> VMEM-resident.
    weight_specs = [pl.BlockSpec(p.shape, lambda i: (0, 0)) for p in kernel_params]

    packed = pl.pallas_call(
        functools.partial(agent_kernel, num_emps=E, num_actions=A),
        out_shape=jax.ShapeDtypeStruct((B, OUT_W), jnp.float32),
        grid=grid,
        in_specs=[pl.BlockSpec((TB, E), lambda i: (i, 0))] + weight_specs,
        out_specs=pl.BlockSpec((TB, OUT_W), lambda i: (i, 0)),
        compiler_params=pltpu.CompilerParams(
            dimension_semantics=("parallel",)),
    )(x, *kernel_params)

    val = packed[:, AE:AE + 1]                 # (B, 1)
    pol = packed[:, :AE].reshape(B, E, A)      # already torch layout: free reshape
    return val, pol


def _linear_init(key, fan_in, fan_out):
    # PyTorch nn.Linear default: U(-1/sqrt(fan_in), 1/sqrt(fan_in))
    kw, kb = jax.random.split(key)
    bound = 1.0 / jnp.sqrt(float(fan_in))
    w = jax.random.uniform(kw, (fan_in, fan_out), jnp.float32, -bound, bound)
    b = jax.random.uniform(kb, (1, fan_out), jnp.float32, -bound, bound)
    return w, b


def init_params(key, num_emps, latent_dim, num_actions):
    E, A = num_emps, num_actions
    AE = A * E
    OUT_W = 128
    assert AE + 1 <= OUT_W, "packed output row must fit in 128 lanes"

    keys = jax.random.split(key, 6)
    w1, b1 = _linear_init(keys[0], num_emps, latent_dim)
    w2, b2 = _linear_init(keys[1], latent_dim, latent_dim)
    wv1, bv1 = _linear_init(keys[2], latent_dim, latent_dim // 2)
    wv2, bv2 = _linear_init(keys[3], latent_dim // 2, 1)
    wp1, bp1 = _linear_init(keys[4], latent_dim, num_emps)
    wp2, bp2 = _linear_init(keys[5], num_emps, AE)
    params = dict(w1=w1, b1=b1, w2=w2, b2=b2, wv1=wv1, bv1=bv1, wv2=wv2,
                  bv2=bv2, wp1=wp1, bp1=bp1, wp2=wp2, bp2=bp2)

    # ---- fused / permuted kernel parameters (built ONCE, off the hot path) ----
    # Policy output columns re-ordered action-major: new col a*E+e == torch col e*A+a.
    wp2_am = wp2.reshape(E, E, A).transpose(0, 2, 1).reshape(E, AE)
    bp2_am = bp2.reshape(1, E, A).transpose(0, 2, 1).reshape(1, AE)

    # Fused head first layer: [value-hidden | policy-hidden] side by side.
    wh1 = jnp.concatenate([wv1, wp1], axis=1)            # (L, L//2 + E)
    bh1 = jnp.concatenate([bv1, bp1], axis=1)            # (1, L//2 + E)

    # Fold the trunk second layer into the fused head first layer (no
    # nonlinearity in between):  rep@wh1 + bh1 == h@(w2@wh1) + (b2@wh1 + bh1).
    w2h1 = jnp.dot(w2, wh1)                               # (L, L//2 + E)
    b2h1 = jnp.dot(b2, wh1) + bh1                         # (1, L//2 + E)

    # Fused head second layer: block diagonal, padded to 128 lane-dense cols.
    #   cols 0..AE-1 : policy logits (action-major)
    #   col  AE      : value
    #   cols AE+1..  : zeros
    hv = latent_dim // 2
    w2_blk = jnp.zeros((hv + E, OUT_W), jnp.float32)
    w2_blk = w2_blk.at[hv:, :AE].set(wp2_am)              # policy rows -> policy cols
    w2_blk = w2_blk.at[:hv, AE].set(wv2[:, 0])            # value rows  -> value col
    b2_blk = jnp.zeros((1, OUT_W), jnp.float32)
    b2_blk = b2_blk.at[:, :AE].set(bp2_am)
    b2_blk = b2_blk.at[:, AE].set(bv2[0, 0])

    # Post-softmax permutation: action-major col a*E+e -> torch col e*A+a,
    # padded to 128 output lanes (zeros in lanes AE..127).
    src = jnp.arange(AE)
    dst = (src % E) * A + (src // E)
    perm = jnp.zeros((AE, OUT_W), jnp.float32).at[src, dst].set(1.0)

    kernel_params = (w1, b1, w2h1, b2h1, w2_blk, b2_blk, perm)
    return params, kernel_params


def reference_forward(x, p, *, num_emps, num_actions):
    hi = jax.lax.Precision.HIGHEST
    rep = jnp.maximum(jnp.dot(x, p["w1"], precision=hi) + p["b1"], 0.0)
    rep = jnp.dot(rep, p["w2"], precision=hi) + p["b2"]
    hv = jnp.maximum(jnp.dot(rep, p["wv1"], precision=hi) + p["bv1"], 0.0)
    val = jnp.dot(hv, p["wv2"], precision=hi) + p["bv2"]
    hp = jnp.maximum(jnp.dot(rep, p["wp1"], precision=hi) + p["bp1"], 0.0)
    logits = jnp.dot(hp, p["wp2"], precision=hi) + p["bp2"]
    pol = jax.nn.softmax(logits.reshape(x.shape[0], num_emps, num_actions), axis=2)
    return val, pol


if __name__ == "__main__":
    num_emps, latent_dim, num_actions = 16, 32, 4
    B = 8

    key = jax.random.PRNGKey(0)
    kx, kp = jax.random.split(key)
    x = jax.random.normal(kx, (B, num_emps), jnp.float32)
    params, kernel_params = init_params(kp, num_emps, latent_dim, num_actions)

    val, pol = agent_forward(x, kernel_params, num_emps=num_emps,
                             num_actions=num_actions)
    jax.block_until_ready((val, pol))

    val_ref, pol_ref = reference_forward(x, params, num_emps=num_emps,
                                         num_actions=num_actions)
    assert val.shape == (B, 1) and pol.shape == (B, num_emps, num_actions)
    assert jnp.allclose(val, val_ref, rtol=2e-3, atol=2e-3)
    assert jnp.allclose(pol, pol_ref, rtol=2e-3, atol=2e-3)
    assert jnp.allclose(pol.sum(axis=2), 1.0, rtol=2e-3, atol=2e-3)

    print("KERNEL_OK")
</pallas_src>

<mosaic_0001>
module attributes {stable_mosaic.version = 11 : i64} {
  func.func @agent_kernel(%arg0: i32, %arg1: memref<8x16xf32, #tpu.memory_space<vmem>>, %arg2: memref<16x32xf32, #tpu.memory_space<vmem>>, %arg3: memref<1x32xf32, #tpu.memory_space<vmem>>, %arg4: memref<32x32xf32, #tpu.memory_space<vmem>>, %arg5: memref<1x32xf32, #tpu.memory_space<vmem>>, %arg6: memref<32x128xf32, #tpu.memory_space<vmem>>, %arg7: memref<1x128xf32, #tpu.memory_space<vmem>>, %arg8: memref<64x128xf32, #tpu.memory_space<vmem>>, %arg9: memref<8x128xf32, #tpu.memory_space<vmem>>) attributes {dimension_semantics = [#tpu.dimension_semantics<parallel>], iteration_bounds = array<i64: 1>, scalar_prefetch = 0 : i64, scratch_operands = 0 : i64, tpu.core_type = #tpu.core_type<tc>, window_params = [{transform_indices = @transform_0, window_bounds = array<i64: 8, 16>}, {pipeline_mode = #tpu.pipeline_mode<synchronous>, transform_indices = @transform_1, window_bounds = array<i64: 16, 32>}, {pipeline_mode = #tpu.pipeline_mode<synchronous>, transform_indices = @transform_2, window_bounds = array<i64: 1, 32>}, {pipeline_mode = #tpu.pipeline_mode<synchronous>, transform_indices = @transform_3, window_bounds = array<i64: 32, 32>}, {pipeline_mode = #tpu.pipeline_mode<synchronous>, transform_indices = @transform_4, window_bounds = array<i64: 1, 32>}, {pipeline_mode = #tpu.pipeline_mode<synchronous>, transform_indices = @transform_5, window_bounds = array<i64: 32, 128>}, {pipeline_mode = #tpu.pipeline_mode<synchronous>, transform_indices = @transform_6, window_bounds = array<i64: 1, 128>}, {pipeline_mode = #tpu.pipeline_mode<synchronous>, transform_indices = @transform_7, window_bounds = array<i64: 64, 128>}, {transform_indices = @transform_8, window_bounds = array<i64: 8, 128>}]} {
    %c0 = arith.constant 0 : index
    %c0_0 = arith.constant 0 : index
    %0 = vector.load %arg1[%c0, %c0_0] : memref<8x16xf32, #tpu.memory_space<vmem>>, vector<8x16xf32>
    %c0_1 = arith.constant 0 : index
    %c0_2 = arith.constant 0 : index
    %1 = vector.load %arg2[%c0_1, %c0_2] : memref<16x32xf32, #tpu.memory_space<vmem>>, vector<16x32xf32>
    %cst = arith.constant dense<0.000000e+00> : vector<8x32xf32>
    %2 = tpu.matmul %0, %1, %cst {dimension_numbers = #tpu.dot_dimension_numbers<[1], [0], [0], [1], [0, 0, 1, 1], [], []>} : vector<8x16xf32>, vector<16x32xf32>, vector<8x32xf32> -> vector<8x32xf32>
    %c0_3 = arith.constant 0 : index
    %c0_4 = arith.constant 0 : index
    %3 = vector.load %arg3[%c0_3, %c0_4] : memref<1x32xf32, #tpu.memory_space<vmem>>, vector<1x32xf32>
    %4 = vector.broadcast %3 : vector<1x32xf32> to vector<8x32xf32>
    %5 = arith.addf %2, %4 : vector<8x32xf32>
    %cst_5 = arith.constant 0.000000e+00 : f32
    %6 = vector.broadcast %cst_5 : f32 to vector<8x32xf32>
    %7 = arith.maximumf %5, %6 : vector<8x32xf32>
    %c0_6 = arith.constant 0 : index
    %c0_7 = arith.constant 0 : index
    %8 = vector.load %arg4[%c0_6, %c0_7] : memref<32x32xf32, #tpu.memory_space<vmem>>, vector<32x32xf32>
    %cst_8 = arith.constant dense<0.000000e+00> : vector<8x32xf32>
    %9 = tpu.matmul %7, %8, %cst_8 {dimension_numbers = #tpu.dot_dimension_numbers<[1], [0], [0], [1], [0, 0, 1, 1], [], []>} : vector<8x32xf32>, vector<32x32xf32>, vector<8x32xf32> -> vector<8x32xf32>
    %c0_9 = arith.constant 0 : index
    %c0_10 = arith.constant 0 : index
    %10 = vector.load %arg5[%c0_9, %c0_10] : memref<1x32xf32, #tpu.memory_space<vmem>>, vector<1x32xf32>
    %11 = vector.broadcast %10 : vector<1x32xf32> to vector<8x32xf32>
    %12 = arith.addf %9, %11 : vector<8x32xf32>
    %cst_11 = arith.constant 0.000000e+00 : f32
    %13 = vector.broadcast %cst_11 : f32 to vector<8x32xf32>
    %14 = arith.maximumf %12, %13 : vector<8x32xf32>
    %c0_12 = arith.constant 0 : index
    %c0_13 = arith.constant 0 : index
    %15 = vector.load %arg6[%c0_12, %c0_13] : memref<32x128xf32, #tpu.memory_space<vmem>>, vector<32x128xf32>
    %cst_14 = arith.constant dense<0.000000e+00> : vector<8x128xf32>
    %16 = tpu.matmul %14, %15, %cst_14 {dimension_numbers = #tpu.dot_dimension_numbers<[1], [0], [0], [1], [0, 0, 1, 1], [], []>} : vector<8x32xf32>, vector<32x128xf32>, vector<8x128xf32> -> vector<8x128xf32>
    %c0_15 = arith.constant 0 : index
    %c0_16 = arith.constant 0 : index
    %17 = vector.load %arg7[%c0_15, %c0_16] : memref<1x128xf32, #tpu.memory_space<vmem>>, vector<1x128xf32>
    %18 = vector.broadcast %17 : vector<1x128xf32> to vector<8x128xf32>
    %19 = arith.addf %16, %18 : vector<8x128xf32>
    %20 = vector.extract_strided_slice %19 {offsets = [0, 0], sizes = [8, 64], strides = [1, 1]} : vector<8x128xf32> to vector<8x64xf32>
    %c16_i32 = arith.constant 16 : i32
    %21 = tpu.dynamic_rotate %20 by %c16_i32 dim 1 : vector<8x64xf32>, i32 -> vector<8x64xf32>
    %22 = arith.maximumf %20, %21 : vector<8x64xf32>
    %c32_i32 = arith.constant 32 : i32
    %23 = tpu.dynamic_rotate %22 by %c32_i32 dim 1 : vector<8x64xf32>, i32 -> vector<8x64xf32>
    %24 = arith.maximumf %22, %23 : vector<8x64xf32>
    %25 = arith.subf %20, %24 : vector<8x64xf32>
    %26 = math.exp %25 : vector<8x64xf32>
    %c16_i32_17 = arith.constant 16 : i32
    %27 = tpu.dynamic_rotate %26 by %c16_i32_17 dim 1 : vector<8x64xf32>, i32 -> vector<8x64xf32>
    %28 = arith.addf %26, %27 : vector<8x64xf32>
    %c32_i32_18 = arith.constant 32 : i32
    %29 = tpu.dynamic_rotate %28 by %c32_i32_18 dim 1 : vector<8x64xf32>, i32 -> vector<8x64xf32>
    %30 = arith.addf %28, %29 : vector<8x64xf32>
    %31 = tpu.reciprocal %30 {approx = true} : vector<8x64xf32> -> vector<8x64xf32>
    %32 = arith.mulf %26, %31 : vector<8x64xf32>
    %c0_19 = arith.constant 0 : index
    %c0_20 = arith.constant 0 : index
    %33 = vector.load %arg8[%c0_19, %c0_20] : memref<64x128xf32, #tpu.memory_space<vmem>>, vector<64x128xf32>
    %cst_21 = arith.constant dense<0.000000e+00> : vector<8x128xf32>
    %34 = tpu.matmul %32, %33, %cst_21 {dimension_numbers = #tpu.dot_dimension_numbers<[1], [0], [0], [1], [0, 0, 1, 1], [], []>} : vector<8x64xf32>, vector<64x128xf32>, vector<8x128xf32> -> vector<8x128xf32>
    %35 = tpu.iota {dimensions = array<i32: 1>} : vector<8x128xi32>
    %c64_i32 = arith.constant 64 : i32
    %36 = vector.broadcast %c64_i32 : i32 to vector<8x128xi32>
    %37 = arith.cmpi slt, %35, %36 : vector<8x128xi32>
    %38 = arith.select %37, %34, %19 : vector<8x128xi1>, vector<8x128xf32>
    %c0_22 = arith.constant 0 : index
    %c0_23 = arith.constant 0 : index
    %39 = vector.load %arg9[%c0_22, %c0_23] : memref<8x128xf32, #tpu.memory_space<vmem>>, vector<8x128xf32>
    tpu.vector_store %arg9[%c0_22, %c0_23], %38 {strides = array<i32>} : memref<8x128xf32, #tpu.memory_space<vmem>>, vector<8x128xf32>,
    return
  }
  func.func @transform_0(%arg0: i32) -> (i32, i32) {
    %c0_i32 = arith.constant 0 : i32
    %c0_i32_0 = arith.constant 0 : i32
    return %arg0, %c0_i32 : i32, i32
  }
  func.func @transform_1(%arg0: i32) -> (i32, i32) {
    %c0_i32 = arith.constant 0 : i32
    %c0_i32_0 = arith.constant 0 : i32
    %c0_i32_1 = arith.constant 0 : i32
    return %c0_i32, %c0_i32_0 : i32, i32
  }
  func.func @transform_2(%arg0: i32) -> (i32, i32) {
    %c0_i32 = arith.constant 0 : i32
    %c0_i32_0 = arith.constant 0 : i32
    %c0_i32_1 = arith.constant 0 : i32
    return %c0_i32, %c0_i32_0 : i32, i32
  }
  func.func @transform_3(%arg0: i32) -> (i32, i32) {
    %c0_i32 = arith.constant 0 : i32
    %c0_i32_0 = arith.constant 0 : i32
    %c0_i32_1 = arith.constant 0 : i32
    return %c0_i32, %c0_i32_0 : i32, i32
  }
  func.func @transform_4(%arg0: i32) -> (i32, i32) {
    %c0_i32 = arith.constant 0 : i32
    %c0_i32_0 = arith.constant 0 : i32
    %c0_i32_1 = arith.constant 0 : i32
    return %c0_i32, %c0_i32_0 : i32, i32
  }
  func.func @transform_5(%arg0: i32) -> (i32, i32) {
    %c0_i32 = arith.constant 0 : i32
    %c0_i32_0 = arith.constant 0 : i32
    %c0_i32_1 = arith.constant 0 : i32
    return %c0_i32, %c0_i32_0 : i32, i32
  }
  func.func @transform_6(%arg0: i32) -> (i32, i32) {
    %c0_i32 = arith.constant 0 : i32
    %c0_i32_0 = arith.constant 0 : i32
    %c0_i32_1 = arith.constant 0 : i32
    return %c0_i32, %c0_i32_0 : i32, i32
  }
  func.func @transform_7(%arg0: i32) -> (i32, i32) {
    %c0_i32 = arith.constant 0 : i32
    %c0_i32_0 = arith.constant 0 : i32
    %c0_i32_1 = arith.constant 0 : i32
    return %c0_i32, %c0_i32_0 : i32, i32
  }
  func.func @transform_8(%arg0: i32) -> (i32, i32) {
    %c0_i32 = arith.constant 0 : i32
    %c0_i32_0 = arith.constant 0 : i32
    return %arg0, %c0_i32 : i32, i32
  }
}

</mosaic_0001>

<llo_original>
// kernel: tpu_custom_call.1
$region0: #{tpu_custom_call.1}
  #allocation0 [shape = 'u32[]', space=smem, size = 0x4, offset = 0x4, fixed_abs, tag = 'smem constant byte address 0x4 - core index']
  #allocation1 [shape = 'u32[144,128]{1,0:T(1,128)}', space=vmem, size = 0x12000, scoped, tag = 'internal scratch']
  %s0 = inlined_call_operand.hbm [shape: f32[8,16], index: 0, kind: input, shape index: {}]
  %s1 = inlined_call_operand.hbm [shape: f32[16,32], index: 1, kind: input, shape index: {}]
  %s2 = inlined_call_operand.vmem [shape: f32[1,32], index: 2, kind: input, shape index: {}]
  %s3 = inlined_call_operand.hbm [shape: f32[32,32], index: 3, kind: input, shape index: {}]
  %s4 = inlined_call_operand.vmem [shape: f32[1,32], index: 4, kind: input, shape index: {}]
  %s5 = inlined_call_operand.hbm [shape: f32[32,128], index: 5, kind: input, shape index: {}]
  %s6 = inlined_call_operand.vmem [shape: f32[1,128], index: 6, kind: input, shape index: {}]
  %s7 = inlined_call_operand.hbm [shape: f32[64,128], index: 7, kind: input, shape index: {}]
  %s8 = inlined_call_operand.hbm [shape: f32[8,128], index: 8, kind: output, shape index: {}]
  %s9 = sld [smem:[#allocation0]]
  $region62: #{tpu_custom_call.1} parent=0
    _
  %s11 = ssub.s32 1, %s9
  %s12 = scalar_select 0, %s11, %s9
  $region1: #{tpu_custom_call.1} parent=0
    #allocation2 [shape = 'u8[4096]{0}', space=vmem, size = 0x1000, scoped, tag = 'input window, operand 0, single buffered']
    #allocation3 [shape = 's32[1]{0}', space=sflag, size = 0x4, scoped, tag = 'scoped memory for tpu_custom_call.1']
    #allocation4 [shape = 's32[1]{0}', space=sflag, size = 0x4, scoped, tag = 'scoped memory for tpu_custom_call.1']
    #allocation5 [shape = 'u8[8192]{0}', space=vmem, size = 0x2000, scoped, tag = 'input window, operand 1, single buffered']
    #allocation6 [shape = 's32[1]{0}', space=sflag, size = 0x4, scoped, tag = 'scoped memory for tpu_custom_call.1']
    #allocation7 [shape = 'u8[16384]{0}', space=vmem, size = 0x4000, scoped, tag = 'input window, operand 3, single buffered']
    #allocation8 [shape = 'u8[16384]{0}', space=vmem, size = 0x4000, scoped, tag = 'input window, operand 5, single buffered']
    #allocation9 [shape = 's32[1]{0}', space=sflag, size = 0x4, scoped, tag = 'scoped memory for tpu_custom_call.1']
    #allocation10 [shape = 'u8[32768]{0}', space=vmem, size = 0x8000, scoped, tag = 'input window, operand 7, single buffered']
    #allocation11 [shape = 'u8[4096]{0}', space=vmem, size = 0x1000, scoped, tag = 'output window, operand 0, single buffered']
    %13 = vsyncpa [#allocation3], 0
    %14 = vsyncpa [#allocation6], 0
    %15 = vsyncpa [#allocation9], 0
    %16 = vsyncpa [#allocation4], 0
    // Predicated region
    $region2: #{tpu_custom_call.1} parent=1 // pred_check
      _
    $region3: #{tpu_custom_call.1} parent=1 // pred_check_branch
      %18 = sbr.rel (0) target = $region5
    $region4: #{tpu_custom_call.1} parent=1 // pred_region
      %s20 = ssub.s32 128, 128
      %21 = vsyncadd [#allocation3], %s20
      %s23 = sshll.u32 [#allocation2], 4
      %s24 = int_to_ptr.vmem [resolvable:$true] %s23
      %26 = dma.hbm_to_vmem [thread:$0]  %s0, 128, %s24, [#allocation3]
    $region5: #{tpu_custom_call.1} parent=1 // pred_fallthru
      _
    // Predicated region
    $region6: #{tpu_custom_call.1} parent=1 // pred_check
      _
    $region7: #{tpu_custom_call.1} parent=1 // pred_check_branch
      %28 = sbr.rel (0) target = $region9
    $region8: #{tpu_custom_call.1} parent=1 // pred_region
      %s30 = ssub.s32 256, 256
      %31 = vsyncadd [#allocation6], %s30
      %s32 = sshll.u32 [#allocation5], 4
      %s33 = int_to_ptr.vmem [resolvable:$true] %s32
      %38 = dma.hbm_to_vmem [thread:$0]  %s1, 256, %s33, [#allocation6], 128, 128, 8
    $region9: #{tpu_custom_call.1} parent=1 // pred_fallthru
      _
    // Predicated region
    $region10: #{tpu_custom_call.1} parent=1 // pred_check
      _
    $region11: #{tpu_custom_call.1} parent=1 // pred_check_branch
      %40 = sbr.rel (0) target = $region13
    $region12: #{tpu_custom_call.1} parent=1 // pred_region
      _
    $region13: #{tpu_custom_call.1} parent=1 // pred_fallthru
      _
    // Predicated region
    $region14: #{tpu_custom_call.1} parent=1 // pred_check
      _
    $region15: #{tpu_custom_call.1} parent=1 // pred_check_branch
      %42 = sbr.rel (0) target = $region17
    $region16: #{tpu_custom_call.1} parent=1 // pred_region
      %s44 = ssub.s32 512, 512
      %45 = vsyncadd [#allocation6], %s44
      %s46 = sshll.u32 [#allocation7], 4
      %s47 = int_to_ptr.vmem [resolvable:$true] %s46
      %52 = dma.hbm_to_vmem [thread:$0]  %s3, 512, %s47, [#allocation6], 128, 128, 8
    $region17: #{tpu_custom_call.1} parent=1 // pred_fallthru
      _
    // Predicated region
    $region18: #{tpu_custom_call.1} parent=1 // pred_check
      _
    $region19: #{tpu_custom_call.1} parent=1 // pred_check_branch
      %54 = sbr.rel (0) target = $region21
    $region20: #{tpu_custom_call.1} parent=1 // pred_region
      _
    $region21: #{tpu_custom_call.1} parent=1 // pred_fallthru
      _
    // Predicated region
    $region22: #{tpu_custom_call.1} parent=1 // pred_check
      _
    $region23: #{tpu_custom_call.1} parent=1 // pred_check_branch
      %56 = sbr.rel (0) target = $region25
    $region24: #{tpu_custom_call.1} parent=1 // pred_region
      %s58 = ssub.s32 512, 512
      %59 = vsyncadd [#allocation9], %s58
      %s60 = sshll.u32 [#allocation8], 4
      %s61 = int_to_ptr.vmem [resolvable:$true] %s60
      %66 = dma.hbm_to_vmem [thread:$0]  %s5, 512, %s61, [#allocation9], 128, 128, 8
    $region25: #{tpu_custom_call.1} parent=1 // pred_fallthru
      _
    // Predicated region
    $region26: #{tpu_custom_call.1} parent=1 // pred_check
      _
    $region27: #{tpu_custom_call.1} parent=1 // pred_check_branch
      %68 = sbr.rel (0) target = $region29
    $region28: #{tpu_custom_call.1} parent=1 // pred_region
      _
    $region29: #{tpu_custom_call.1} parent=1 // pred_fallthru
      _
    // Predicated region
    $region30: #{tpu_custom_call.1} parent=1 // pred_check
      _
    $region31: #{tpu_custom_call.1} parent=1 // pred_check_branch
      %70 = sbr.rel (0) target = $region33
    $region32: #{tpu_custom_call.1} parent=1 // pred_region
      %s72 = ssub.s32 1024, 1024
      %73 = vsyncadd [#allocation9], %s72
      %s74 = sshll.u32 [#allocation10], 4
      %s75 = int_to_ptr.vmem [resolvable:$true] %s74
      %80 = dma.hbm_to_vmem [thread:$0]  %s7, 1024, %s75, [#allocation9], 128, 128, 8
    $region33: #{tpu_custom_call.1} parent=1 // pred_fallthru
      _
    // Predicated region
    $region34: #{tpu_custom_call.1} parent=1 // pred_check
      _
    $region35: #{tpu_custom_call.1} parent=1 // pred_check_branch
      %82 = sbr.rel (0) target = $region37
    $region36: #{tpu_custom_call.1} parent=1 // pred_region
      %83 = dma.done [#allocation3], 128
    $region37: #{tpu_custom_call.1} parent=1 // pred_fallthru
      _
    // Predicated region
    $region38: #{tpu_custom_call.1} parent=1 // pred_check
      _
    $region39: #{tpu_custom_call.1} parent=1 // pred_check_branch
      %85 = sbr.rel (0) target = $region41
    $region40: #{tpu_custom_call.1} parent=1 // pred_region
      %86 = dma.done [#allocation6], 256
    $region41: #{tpu_custom_call.1} parent=1 // pred_fallthru
      _
    // Predicated region
    $region42: #{tpu_custom_call.1} parent=1 // pred_check
      _
    $region43: #{tpu_custom_call.1} parent=1 // pred_check_branch
      %88 = sbr.rel (0) target = $region45
    $region44: #{tpu_custom_call.1} parent=1 // pred_region
      %89 = dma.done [#allocation6], 512
    $region45: #{tpu_custom_call.1} parent=1 // pred_fallthru
      _
    // Predicated region
    $region46: #{tpu_custom_call.1} parent=1 // pred_check
      _
    $region47: #{tpu_custom_call.1} parent=1 // pred_check_branch
      %91 = sbr.rel (0) target = $region49
    $region48: #{tpu_custom_call.1} parent=1 // pred_region
      %92 = dma.done [#allocation9], 512
    $region49: #{tpu_custom_call.1} parent=1 // pred_fallthru
      _
    // Predicated region
    $region50: #{tpu_custom_call.1} parent=1 // pred_check
      _
    $region51: #{tpu_custom_call.1} parent=1 // pred_check_branch
      %94 = sbr.rel (0) target = $region53
    $region52: #{tpu_custom_call.1} parent=1 // pred_region
      %95 = dma.done [#allocation9], 1024
    $region53: #{tpu_custom_call.1} parent=1 // pred_fallthru
      _
    %v96 = vld [vmem:[#allocation2] sm:$0xff]
    %v97 = vld [vmem:[#allocation5] sm:$0xff]
    %v98 = vld [vmem:[#allocation5 + $0x8] sm:$0xff]
    %v99 = vld [vmem:[%s2] sm:$0x1]
    %v101 = vlaneseq
    %v102 = vshrl.u32 %v101, 7
    %v103 = vsub.s32 0, %v102
    %v104 = vrot.slane %v99, %v103
    %vm106 = vcmask 130048
    %v108 = vsel %vm106, %v96, 0
    %110 = vmatprep.subr.mxu0 0.0
    %111 = vmatpush1.msra.mxu0 %v97
    %112 = vmatprep.subr.mxu0 0.0
    %113 = vmatpush1.msra.mxu0 %v98
    %114 = vmatprep.subr.mxu0 0.0
    %115 = vmatpush1.msra.mxu0 0.0
    %116 = vmatprep.subr.mxu0 0.0
    %117 = vmatpush1.msra.mxu0 0.0
    %118 = vmatprep.subr.mxu0 0.0
    %119 = vmatpush1.msra.mxu0 0.0
    %120 = vmatprep.subr.mxu0 0.0
    %121 = vmatpush1.msra.mxu0 0.0
    %122 = vmatprep.subr.mxu0 0.0
    %123 = vmatpush1.msra.mxu0 0.0
    %124 = vmatprep.subr.mxu0 0.0
    %125 = vmatpush1.msra.mxu0 0.0
    %126 = vmatprep.subr.mxu0 0.0
    %127 = vmatpush1.msra.mxu0 0.0
    %128 = vmatprep.subr.mxu0 0.0
    %129 = vmatpush1.msra.mxu0 0.0
    %130 = vmatprep.subr.mxu0 0.0
    %131 = vmatpush1.msra.mxu0 0.0
    %132 = vmatprep.subr.mxu0 0.0
    %133 = vmatpush1.msra.mxu0 0.0
    %134 = vmatprep.subr.mxu0 0.0
    %135 = vmatpush1.msra.mxu0 0.0
    %136 = vmatprep.subr.mxu0 0.0
    %137 = vmatpush1.msra.mxu0 0.0
    %138 = vmatprep.subr.mxu0 0.0
    %139 = vmatpush1.msra.mxu0 0.0
    %140 = vmatprep.subr.mxu0 0.0
    %141 = vmatpush1.msra.mxu0 0.0
    %142 = vmatprep.subr.mxu0 0.0
    %143 = vmatpush1.msra.mxu0 0.0
    %144 = vmatprep.subr.mxu0 0.0
    %145 = vmatpush1.msra.mxu0 0.0
    %146 = vmatprep.subr.mxu0 0.0
    %147 = vmatpush1.msra.mxu0 0.0
    %148 = vmatprep.subr.mxu0 0.0
    %149 = vmatpush1.msra.mxu0 0.0
    %150 = vmatprep.subr.mxu0 0.0
    %151 = vmatpush1.msra.mxu0 0.0
    %152 = vmatprep.subr.mxu0 0.0
    %153 = vmatpush1.msra.mxu0 0.0
    %154 = vmatprep.subr.mxu0 0.0
    %155 = vmatpush1.msra.mxu0 0.0
    %156 = vmatprep.subr.mxu0 0.0
    %157 = vmatpush1.msra.mxu0 0.0
    %158 = vmatprep.subr.mxu0 0.0
    %159 = vmatpush1.msra.mxu0 0.0
    %160 = vmatprep.subr.mxu0 0.0
    %161 = vmatpush1.msra.mxu0 0.0
    %162 = vmatprep.subr.mxu0 0.0
    %163 = vmatpush1.msra.mxu0 0.0
    %164 = vmatprep.subr.mxu0 0.0
    %165 = vmatpush1.msra.mxu0 0.0
    %166 = vmatprep.subr.mxu0 0.0
    %167 = vmatpush1.msra.mxu0 0.0
    %168 = vmatprep.subr.mxu0 0.0
    %169 = vmatpush1.msra.mxu0 0.0
    %170 = vmatprep.subr.mxu0 0.0
    %171 = vmatpush1.msra.mxu0 0.0
    %172 = vmatprep.subr.mxu0 0.0
    %173 = vmatpush1.msra.mxu0 0.0
    %174 = vmatprep.mubr.f32.mxu0 0.0
    %175 = vmatmul.mubr.f32.gmra.mrb[0].mxu0 %v108
    %v176 = vpop.f32.mrb[0].mxu0
    %v177 = vadd.f32 %v104, %v176
    %v178 = vpop.f32.mrb[0].mxu0
    %179 = vdwg.mxu0
    %v180 = vmax.f32 %v177, 0.0
    %v181 = vld [vmem:[#allocation7] sm:$0xff]
    %v182 = vld [vmem:[#allocation7 + $0x8] sm:$0xff]
    %v183 = vld [vmem:[#allocation7 + $0x10] sm:$0xff]
    %v184 = vld [vmem:[#allocation7 + $0x18] sm:$0xff]
    %v185 = vld [vmem:[%s4] sm:$0x1]
    %v187 = vlaneseq
    %v188 = vshrl.u32 %v187, 7
    %v189 = vsub.s32 0, %v188
    %v190 = vrot.slane %v185, %v189
    %vm192 = vcmask 261120
    %v194 = vsel %vm192, %v180, 0
    %196 = vmatprep.subr.mxu0 0.0
    %197 = vmatpush1.msra.mxu0 %v181
    %198 = vmatprep.subr.mxu0 0.0
    %199 = vmatpush1.msra.mxu0 %v182
    %200 = vmatprep.subr.mxu0 0.0
    %201 = vmatpush1.msra.mxu0 %v183
    %202 = vmatprep.subr.mxu0 0.0
    %203 = vmatpush1.msra.mxu0 %v184
    %204 = vmatprep.subr.mxu0 0.0
    %205 = vmatpush1.msra.mxu0 0.0
    %206 = vmatprep.subr.mxu0 0.0
    %207 = vmatpush1.msra.mxu0 0.0
    %208 = vmatprep.subr.mxu0 0.0
    %209 = vmatpush1.msra.mxu0 0.0
    %210 = vmatprep.subr.mxu0 0.0
    %211 = vmatpush1.msra.mxu0 0.0
    %212 = vmatprep.subr.mxu0 0.0
    %213 = vmatpush1.msra.mxu0 0.0
    %214 = vmatprep.subr.mxu0 0.0
    %215 = vmatpush1.msra.mxu0 0.0
    %216 = vmatprep.subr.mxu0 0.0
    %217 = vmatpush1.msra.mxu0 0.0
    %218 = vmatprep.subr.mxu0 0.0
    %219 = vmatpush1.msra.mxu0 0.0
    %220 = vmatprep.subr.mxu0 0.0
    %221 = vmatpush1.msra.mxu0 0.0
    %222 = vmatprep.subr.mxu0 0.0
    %223 = vmatpush1.msra.mxu0 0.0
    %224 = vmatprep.subr.mxu0 0.0
    %225 = vmatpush1.msra.mxu0 0.0
    %226 = vmatprep.subr.mxu0 0.0
    %227 = vmatpush1.msra.mxu0 0.0
    %228 = vmatprep.subr.mxu0 0.0
    %229 = vmatpush1.msra.mxu0 0.0
    %230 = vmatprep.subr.mxu0 0.0
    %231 = vmatpush1.msra.mxu0 0.0
    %232 = vmatprep.subr.mxu0 0.0
    %233 = vmatpush1.msra.mxu0 0.0
    %234 = vmatprep.subr.mxu0 0.0
    %235 = vmatpush1.msra.mxu0 0.0
    %236 = vmatprep.subr.mxu0 0.0
    %237 = vmatpush1.msra.mxu0 0.0
    %238 = vmatprep.subr.mxu0 0.0
    %239 = vmatpush1.msra.mxu0 0.0
    %240 = vmatprep.subr.mxu0 0.0
    %241 = vmatpush1.msra.mxu0 0.0
    %242 = vmatprep.subr.mxu0 0.0
    %243 = vmatpush1.msra.mxu0 0.0
    %244 = vmatprep.subr.mxu0 0.0
    %245 = vmatpush1.msra.mxu0 0.0
    %246 = vmatprep.subr.mxu0 0.0
    %247 = vmatpush1.msra.mxu0 0.0
    %248 = vmatprep.subr.mxu0 0.0
    %249 = vmatpush1.msra.mxu0 0.0
    %250 = vmatprep.subr.mxu0 0.0
    %251 = vmatpush1.msra.mxu0 0.0
    %252 = vmatprep.subr.mxu0 0.0
    %253 = vmatpush1.msra.mxu0 0.0
    %254 = vmatprep.subr.mxu0 0.0
    %255 = vmatpush1.msra.mxu0 0.0
    %256 = vmatprep.subr.mxu0 0.0
    %257 = vmatpush1.msra.mxu0 0.0
    %258 = vmatprep.subr.mxu0 0.0
    %259 = vmatpush1.msra.mxu0 0.0
    %260 = vmatprep.mubr.f32.mxu0 0.0
    %261 = vmatmul.mubr.f32.gmra.mrb[0].mxu0 %v194
    %v262 = vpop.f32.mrb[0].mxu0
    %v263 = vadd.f32 %v190, %v262
    %v264 = vpop.f32.mrb[0].mxu0
    %265 = vdwg.mxu0
    %v266 = vmax.f32 %v263, 0.0
    %v267 = vld [vmem:[#allocation8] sm:$0xff]
    %v268 = vld [vmem:[#allocation8 + $0x8] sm:$0xff]
    %v269 = vld [vmem:[#allocation8 + $0x10] sm:$0xff]
    %v270 = vld [vmem:[#allocation8 + $0x18] sm:$0xff]
    %v271 = vld [vmem:[%s6] sm:$0x1]
    %v273 = vlaneseq
    %v274 = vshrl.u32 %v273, 7
    %v275 = vsub.s32 0, %v274
    %v276 = vrot.slane %v271, %v275
    %v279 = vsel %vm192, %v266, 0
    %281 = vmatprep.subr.mxu0 0.0
    %282 = vmatpush1.msra.mxu0 %v267
    %283 = vmatprep.subr.mxu0 0.0
    %284 = vmatpush1.msra.mxu0 %v268
    %285 = vmatprep.subr.mxu0 0.0
    %286 = vmatpush1.msra.mxu0 %v269
    %287 = vmatprep.subr.mxu0 0.0
    %288 = vmatpush1.msra.mxu0 %v270
    %289 = vmatprep.subr.mxu0 0.0
    %290 = vmatpush1.msra.mxu0 0.0
    %291 = vmatprep.subr.mxu0 0.0
    %292 = vmatpush1.msra.mxu0 0.0
    %293 = vmatprep.subr.mxu0 0.0
    %294 = vmatpush1.msra.mxu0 0.0
    %295 = vmatprep.subr.mxu0 0.0
    %296 = vmatpush1.msra.mxu0 0.0
    %297 = vmatprep.subr.mxu0 0.0
    %298 = vmatpush1.msra.mxu0 0.0
    %299 = vmatprep.subr.mxu0 0.0
    %300 = vmatpush1.msra.mxu0 0.0
    %301 = vmatprep.subr.mxu0 0.0
    %302 = vmatpush1.msra.mxu0 0.0
    %303 = vmatprep.subr.mxu0 0.0
    %304 = vmatpush1.msra.mxu0 0.0
    %305 = vmatprep.subr.mxu0 0.0
    %306 = vmatpush1.msra.mxu0 0.0
    %307 = vmatprep.subr.mxu0 0.0
    %308 = vmatpush1.msra.mxu0 0.0
    %309 = vmatprep.subr.mxu0 0.0
    %310 = vmatpush1.msra.mxu0 0.0
    %311 = vmatprep.subr.mxu0 0.0
    %312 = vmatpush1.msra.mxu0 0.0
    %313 = vmatprep.subr.mxu0 0.0
    %314 = vmatpush1.msra.mxu0 0.0
    %315 = vmatprep.subr.mxu0 0.0
    %316 = vmatpush1.msra.mxu0 0.0
    %317 = vmatprep.subr.mxu0 0.0
    %318 = vmatpush1.msra.mxu0 0.0
    %319 = vmatprep.subr.mxu0 0.0
    %320 = vmatpush1.msra.mxu0 0.0
    %321 = vmatprep.subr.mxu0 0.0
    %322 = vmatpush1.msra.mxu0 0.0
    %323 = vmatprep.subr.mxu0 0.0
    %324 = vmatpush1.msra.mxu0 0.0
    %325 = vmatprep.subr.mxu0 0.0
    %326 = vmatpush1.msra.mxu0 0.0
    %327 = vmatprep.subr.mxu0 0.0
    %328 = vmatpush1.msra.mxu0 0.0
    %329 = vmatprep.subr.mxu0 0.0
    %330 = vmatpush1.msra.mxu0 0.0
    %331 = vmatprep.subr.mxu0 0.0
    %332 = vmatpush1.msra.mxu0 0.0
    %333 = vmatprep.subr.mxu0 0.0
    %334 = vmatpush1.msra.mxu0 0.0
    %335 = vmatprep.subr.mxu0 0.0
    %336 = vmatpush1.msra.mxu0 0.0
    %337 = vmatprep.subr.mxu0 0.0
    %338 = vmatpush1.msra.mxu0 0.0
    %339 = vmatprep.subr.mxu0 0.0
    %340 = vmatpush1.msra.mxu0 0.0
    %341 = vmatprep.subr.mxu0 0.0
    %342 = vmatpush1.msra.mxu0 0.0
    %343 = vmatprep.subr.mxu0 0.0
    %344 = vmatpush1.msra.mxu0 0.0
    %345 = vmatprep.mubr.f32.mxu0 0.0
    %346 = vmatmul.mubr.f32.gmra.mrb[0].mxu0 %v279
    %v347 = vpop.f32.mrb[0].mxu0
    %v348 = vadd.f32 %v276, %v347
    %v349 = vpop.f32.mrb[0].mxu0
    %350 = vdwg.mxu0
    %vm351 = vcmask 1048064
    %352 = vrot.lane.b32.xlu0 %v348, 64
    %v353 = vpop.permute.xlu0 %352
    %v354 = vsel %vm351, %v353, %v348
    %355 = vrot.lane.b32.xlu0 %v354, 64
    %v356 = vpop.permute.xlu0 %355
    %v357 = vsel %vm351, %v356, %v348
    %359 = vrot.lane.b32.xlu0 %v357, 80
    %v360 = vpop.permute.xlu0 %359
    %v362 = vmax.f32 %v348, %v360
    %363 = vrot.lane.b32.xlu0 %v362, 64
    %v364 = vpop.permute.xlu0 %363
    %v365 = vsel %vm351, %v364, %v362
    %366 = vrot.lane.b32.xlu0 %v365, 64
    %v367 = vpop.permute.xlu0 %366
    %v368 = vsel %vm351, %v367, %v362
    %370 = vrot.lane.b32.xlu0 %v368, 96
    %v371 = vpop.permute.xlu0 %370
    %v373 = vmax.f32 %v362, %v371
    %v374 = vsub.f32 %v348, %v373
    %v375 = vmul.f32 %v374, 1.442695
    %v376 = vpow.pop %v375
    %377 = vrot.lane.b32.xlu0 %v376, 64
    %v378 = vpop.permute.xlu0 %377
    %v379 = vsel %vm351, %v378, %v376
    %380 = vrot.lane.b32.xlu0 %v379, 64
    %v381 = vpop.permute.xlu0 %380
    %v382 = vsel %vm351, %v381, %v376
    %384 = vrot.lane.b32.xlu0 %v382, 80
    %v385 = vpop.permute.xlu0 %384
    %v387 = vadd.f32 %v376, %v385
    %388 = vrot.lane.b32.xlu0 %v387, 64
    %v389 = vpop.permute.xlu0 %388
    %v390 = vsel %vm351, %v389, %v387
    %391 = vrot.lane.b32.xlu0 %v390, 64
    %v392 = vpop.permute.xlu0 %391
    %v393 = vsel %vm351, %v392, %v387
    %395 = vrot.lane.b32.xlu0 %v393, 96
    %v396 = vpop.permute.xlu0 %395
    %v398 = vadd.f32 %v387, %v396
    %v399 = vrcp.pop %v398
    %v400 = vmul.f32 %v376, %v399
    %v401 = vld [vmem:[#allocation10] sm:$0xff]
    %v402 = vld [vmem:[#allocation10 + $0x8] sm:$0xff]
    %v403 = vld [vmem:[#allocation10 + $0x10] sm:$0xff]
    %v404 = vld [vmem:[#allocation10 + $0x18] sm:$0xff]
    %v405 = vld [vmem:[#allocation10 + $0x20] sm:$0xff]
    %v406 = vld [vmem:[#allocation10 + $0x28] sm:$0xff]
    %v407 = vld [vmem:[#allocation10 + $0x30] sm:$0xff]
    %v408 = vld [vmem:[#allocation10 + $0x38] sm:$0xff]
    %vm409 = vcmask 523264
    %v411 = vsel %vm409, %v400, 0
    %413 = vmatprep.subr.mxu0 0.0
    %414 = vmatpush1.msra.mxu0 %v401
    %415 = vmatprep.subr.mxu0 0.0
    %416 = vmatpush1.msra.mxu0 %v402
    %417 = vmatprep.subr.mxu0 0.0
    %418 = vmatpush1.msra.mxu0 %v403
    %419 = vmatprep.subr.mxu0 0.0
    %420 = vmatpush1.msra.mxu0 %v404
    %421 = vmatprep.subr.mxu0 0.0
    %422 = vmatpush1.msra.mxu0 %v405
    %423 = vmatprep.subr.mxu0 0.0
    %424 = vmatpush1.msra.mxu0 %v406
    %425 = vmatprep.subr.mxu0 0.0
    %426 = vmatpush1.msra.mxu0 %v407
    %427 = vmatprep.subr.mxu0 0.0
    %428 = vmatpush1.msra.mxu0 %v408
    %429 = vmatprep.subr.mxu0 0.0
    %430 = vmatpush1.msra.mxu0 0.0
    %431 = vmatprep.subr.mxu0 0.0
    %432 = vmatpush1.msra.mxu0 0.0
    %433 = vmatprep.subr.mxu0 0.0
    %434 = vmatpush1.msra.mxu0 0.0
    %435 = vmatprep.subr.mxu0 0.0
    %436 = vmatpush1.msra.mxu0 0.0
    %437 = vmatprep.subr.mxu0 0.0
    %438 = vmatpush1.msra.mxu0 0.0
    %439 = vmatprep.subr.mxu0 0.0
    %440 = vmatpush1.msra.mxu0 0.0
    %441 = vmatprep.subr.mxu0 0.0
    %442 = vmatpush1.msra.mxu0 0.0
    %443 = vmatprep.subr.mxu0 0.0
    %444 = vmatpush1.msra.mxu0 0.0
    %445 = vmatprep.subr.mxu0 0.0
    %446 = vmatpush1.msra.mxu0 0.0
    %447 = vmatprep.subr.mxu0 0.0
    %448 = vmatpush1.msra.mxu0 0.0
    %449 = vmatprep.subr.mxu0 0.0
    %450 = vmatpush1.msra.mxu0 0.0
    %451 = vmatprep.subr.mxu0 0.0
    %452 = vmatpush1.msra.mxu0 0.0
    %453 = vmatprep.subr.mxu0 0.0
    %454 = vmatpush1.msra.mxu0 0.0
    %455 = vmatprep.subr.mxu0 0.0
    %456 = vmatpush1.msra.mxu0 0.0
    %457 = vmatprep.subr.mxu0 0.0
    %458 = vmatpush1.msra.mxu0 0.0
    %459 = vmatprep.subr.mxu0 0.0
    %460 = vmatpush1.msra.mxu0 0.0
    %461 = vmatprep.subr.mxu0 0.0
    %462 = vmatpush1.msra.mxu0 0.0
    %463 = vmatprep.subr.mxu0 0.0
    %464 = vmatpush1.msra.mxu0 0.0
    %465 = vmatprep.subr.mxu0 0.0
    %466 = vmatpush1.msra.mxu0 0.0
    %467 = vmatprep.subr.mxu0 0.0
    %468 = vmatpush1.msra.mxu0 0.0
    %469 = vmatprep.subr.mxu0 0.0
    %470 = vmatpush1.msra.mxu0 0.0
    %471 = vmatprep.subr.mxu0 0.0
    %472 = vmatpush1.msra.mxu0 0.0
    %473 = vmatprep.subr.mxu0 0.0
    %474 = vmatpush1.msra.mxu0 0.0
    %475 = vmatprep.subr.mxu0 0.0
    %476 = vmatpush1.msra.mxu0 0.0
    %477 = vmatprep.mubr.f32.mxu0 0.0
    %478 = vmatmul.mubr.f32.gmra.mrb[0].mxu0 %v411
    %v479 = vpop.f32.mrb[0].mxu0
    %v480 = vadd.f32 0.0, %v479
    %v481 = vpop.f32.mrb[0].mxu0
    %482 = vdwg.mxu0
    %v483 = vlaneseq
    %v484 = vand.u32 %v483, 127
    %vm485 = vcmp.lt.s32.totalorder %v484, 64
    %v486 = vsel %vm485, %v480, %v348
    %487 = vst [vmem:[#allocation11] sm:$0xff] %v486
    // Predicated region
    $region54: #{tpu_custom_call.1} parent=1 // pred_check
      _
    $region55: #{tpu_custom_call.1} parent=1 // pred_check_branch
      %489 = sbr.rel (0) target = $region57
    $region56: #{tpu_custom_call.1} parent=1 // pred_region
      %s491 = ssub.s32 128, 128
      %492 = vsyncadd [#allocation4], %s491
      %s494 = sshll.u32 [#allocation11], 4
      %s495 = int_to_ptr.vmem [resolvable:$true] %s494
      %497 = dma.vmem_to_hbm [thread:$0]  %s495, 128, %s8, [#allocation4]
    $region57: #{tpu_custom_call.1} parent=1 // pred_fallthru
      _
    // Predicated region
    $region58: #{tpu_custom_call.1} parent=1 // pred_check
      _
    $region59: #{tpu_custom_call.1} parent=1 // pred_check_branch
      %499 = sbr.rel (0) target = $region61
    $region60: #{tpu_custom_call.1} parent=1 // pred_region
      %500 = dma.done [#allocation4], 128
    $region61: #{tpu_custom_call.1} parent=1 // pred_fallthru
      _
    %501 = vsyncpa [#allocation3], 1
    %502 = vsyncpa [#allocation6], 1
    %503 = vsyncpa [#allocation9], 1
    %504 = vsyncpa [#allocation4], 1

</llo_original>
